<compile_context>
chip_gen: v6e
topology: v6e:2x2x1
jax: 0.10.0
libtpu: 0.0.40
codegen_flags: <defaults>
</compile_context>

<pallas_src>
import jax
import jax.numpy as jnp
from jax.experimental import pallas as pl
from jax.experimental.pallas import tpu as pltpu


def _round_up(x, m):
    return ((x + m - 1) // m) * m


def _mlp_kernel(x_ref, w_ref, b_ref, wout_ref, bout_ref, o_ref):
    # x_ref:    (TB, H)          activation tile
    # w_ref:    (L, H_in, H_out) hidden weights, already transposed to (in, out)
    # b_ref:    (L, 1, H)        hidden biases
    # wout_ref: (H, O_pad)       output weight, (in, out) layout, lane-dense padded
    # bout_ref: (1, O_pad)       output bias (zero in the padded lanes)
    # o_ref:    (TB, O_pad)
    n_layer = w_ref.shape[0]  # static at trace time
    h = x_ref[...]
    for l in range(n_layer):  # static python unroll
        h = jnp.maximum(
            jnp.dot(h, w_ref[l], preferred_element_type=jnp.float32) + b_ref[l],
            0.0,
        )
    # TODO(synk): nn.Dropout is identity in eval / deterministic forward; omitted.
    # The module's self.act (Sigmoid) is never applied in forward, so it is not applied.
    o_ref[...] = (
        jnp.dot(h, wout_ref[...], preferred_element_type=jnp.float32) + bout_ref[...]
    )


def prepare_params(w_stack, b_stack, w_out, b_out):
    """One-time parameter prep (hoisted off the per-call path):
       - transpose torch (out, in) weights to (in, out) for plain MXU matmuls,
       - zero-pad the output head to a lane-dense (multiple-of-128) width,
       - reshape biases for in-kernel broadcast."""
    L, H, _ = w_stack.shape
    O = w_out.shape[0]
    o_pad = _round_up(max(O, 128), 128)

    w_t = jnp.transpose(w_stack, (0, 2, 1))                                # (L, in, out)
    b_2d = b_stack.reshape(L, 1, H)                                        # (L, 1, H)
    w_out_t = jnp.zeros((H, o_pad), w_out.dtype).at[:, :O].set(w_out.T)    # (in, out_pad)
    b_out_p = jnp.zeros((1, o_pad), b_out.dtype).at[0, :O].set(b_out)      # (1, out_pad)
    return w_t, b_2d, w_out_t, b_out_p, O


def funcs_forward(x, w_t, b_2d, w_out_t, b_out_p, out_dim, *, tb=256):
    """x: (B, H) float32. Prepared params from `prepare_params`. Returns (B, out_dim)."""
    B, H = x.shape
    L = w_t.shape[0]
    o_pad = w_out_t.shape[1]

    # Batch tile: multiple of 8 sublanes, no larger than needed for this batch.
    tb = min(tb, _round_up(B, 8))
    grid = (pl.cdiv(B, tb),)

    # VMEM budget: resident weights + double-buffered x/out tiles, clamped to v7x 64 MiB.
    weight_bytes = 4 * (L * H * H + L * H + o_pad * H + o_pad)
    tile_bytes = 4 * (tb * H + tb * o_pad)
    vmem_limit = int(
        min(64 * 1024 * 1024,
            max(16 * 1024 * 1024, weight_bytes + 2 * tile_bytes + (4 << 20)))
    )

    out_padded = pl.pallas_call(
        _mlp_kernel,
        out_shape=jax.ShapeDtypeStruct((B, o_pad), jnp.float32),
        grid=grid,
        in_specs=[
            pl.BlockSpec((tb, H), lambda i: (i, 0)),        # x: batch-tiled
            pl.BlockSpec((L, H, H), lambda i: (0, 0, 0)),   # hidden weights: VMEM-resident
            pl.BlockSpec((L, 1, H), lambda i: (0, 0, 0)),   # hidden biases:  VMEM-resident
            pl.BlockSpec((H, o_pad), lambda i: (0, 0)),     # out weight:     VMEM-resident
            pl.BlockSpec((1, o_pad), lambda i: (0, 0)),     # out bias:       VMEM-resident
        ],
        out_specs=pl.BlockSpec((tb, o_pad), lambda i: (i, 0)),
        compiler_params=pltpu.CompilerParams(
            dimension_semantics=("parallel",),
            vmem_limit_bytes=vmem_limit,
        ),
    )(x, w_t, b_2d, w_out_t, b_out_p)

    if o_pad == out_dim:
        return out_padded
    return out_padded[:, :out_dim]


def _torch_linear_init(key, out_features, in_features):
    """Deterministic init matching nn.Linear default: U(-1/sqrt(in), 1/sqrt(in))."""
    kw, kb = jax.random.split(key)
    bound = 1.0 / jnp.sqrt(jnp.float32(in_features))
    w = jax.random.uniform(kw, (out_features, in_features), jnp.float32, -bound, bound)
    b = jax.random.uniform(kb, (out_features,), jnp.float32, -bound, bound)
    return w, b


def _reference(x, w_stack, b_stack, w_out, b_out):
    h = x
    for l in range(w_stack.shape[0]):
        h = jnp.maximum(h @ w_stack[l].T + b_stack[l], 0.0)
    return h @ w_out.T + b_out


if __name__ == "__main__":
    n_layer = 2
    hidden_dim = 32
    output_dim = 16
    batch = 8

    key = jax.random.PRNGKey(0)
    k_x, *k_lins = jax.random.split(key, 2 + n_layer)

    x = jax.random.normal(k_x, (batch, hidden_dim), jnp.float32)

    ws, bs = [], []
    for l in range(n_layer):
        w, b = _torch_linear_init(k_lins[l], hidden_dim, hidden_dim)
        ws.append(w)
        bs.append(b)
    w_stack = jnp.stack(ws, axis=0)          # (L, H, H)  torch layout (out, in)
    b_stack = jnp.stack(bs, axis=0)          # (L, H)
    w_out, b_out = _torch_linear_init(k_lins[-1], output_dim, hidden_dim)

    # One-time parameter prep (transpose / pad / bias reshape), hoisted off the call path.
    w_t, b_2d, w_out_t, b_out_p, O = prepare_params(w_stack, b_stack, w_out, b_out)

    fwd = jax.jit(funcs_forward, static_argnames=("out_dim", "tb"))
    y = fwd(x, w_t, b_2d, w_out_t, b_out_p, out_dim=O)
    y = jax.block_until_ready(y)

    y_ref = _reference(x, w_stack, b_stack, w_out, b_out)
    assert y.shape == (batch, output_dim)
    assert jnp.allclose(y, y_ref, atol=1e-5, rtol=1e-5), "mismatch vs reference"

    print("KERNEL_OK")
</pallas_src>

<mosaic_0001>
module attributes {stable_mosaic.version = 11 : i64} {
  func.func @_mlp_kernel(%arg0: i32, %arg1: memref<8x32xf32, #tpu.memory_space<vmem>>, %arg2: memref<2x32x32xf32, #tpu.memory_space<vmem>>, %arg3: memref<2x1x32xf32, #tpu.memory_space<vmem>>, %arg4: memref<32x128xf32, #tpu.memory_space<vmem>>, %arg5: memref<1x128xf32, #tpu.memory_space<vmem>>, %arg6: memref<8x128xf32, #tpu.memory_space<vmem>>) attributes {dimension_semantics = [#tpu.dimension_semantics<parallel>], iteration_bounds = array<i64: 1>, scalar_prefetch = 0 : i64, scratch_operands = 0 : i64, tpu.core_type = #tpu.core_type<tc>, window_params = [{transform_indices = @transform_0, window_bounds = array<i64: 8, 32>}, {pipeline_mode = #tpu.pipeline_mode<synchronous>, transform_indices = @transform_1, window_bounds = array<i64: 2, 32, 32>}, {pipeline_mode = #tpu.pipeline_mode<synchronous>, transform_indices = @transform_2, window_bounds = array<i64: 2, 1, 32>}, {pipeline_mode = #tpu.pipeline_mode<synchronous>, transform_indices = @transform_3, window_bounds = array<i64: 32, 128>}, {pipeline_mode = #tpu.pipeline_mode<synchronous>, transform_indices = @transform_4, window_bounds = array<i64: 1, 128>}, {transform_indices = @transform_5, window_bounds = array<i64: 8, 128>}]} {
    %c0 = arith.constant 0 : index
    %c0_0 = arith.constant 0 : index
    %0 = vector.load %arg1[%c0, %c0_0] : memref<8x32xf32, #tpu.memory_space<vmem>>, vector<8x32xf32>
    %c0_1 = arith.constant 0 : index
    %c0_2 = arith.constant 0 : index
    %c0_3 = arith.constant 0 : index
    %1 = vector.load %arg2[%c0_1, %c0_2, %c0_3] : memref<2x32x32xf32, #tpu.memory_space<vmem>>, vector<1x32x32xf32>
    %2 = vector.shape_cast %1 : vector<1x32x32xf32> to vector<32x32xf32>
    %cst = arith.constant dense<0.000000e+00> : vector<8x32xf32>
    %3 = tpu.matmul %0, %2, %cst {dimension_numbers = #tpu.dot_dimension_numbers<[1], [0], [0], [1], [0, 0, 1, 1], [], []>} : vector<8x32xf32>, vector<32x32xf32>, vector<8x32xf32> -> vector<8x32xf32>
    %c0_4 = arith.constant 0 : index
    %c0_5 = arith.constant 0 : index
    %c0_6 = arith.constant 0 : index
    %4 = vector.load %arg3[%c0_4, %c0_5, %c0_6] : memref<2x1x32xf32, #tpu.memory_space<vmem>>, vector<1x1x32xf32>
    %5 = vector.shape_cast %4 : vector<1x1x32xf32> to vector<1x32xf32>
    %6 = vector.broadcast %5 : vector<1x32xf32> to vector<8x32xf32>
    %7 = arith.addf %3, %6 : vector<8x32xf32>
    %cst_7 = arith.constant 0.000000e+00 : f32
    %8 = vector.broadcast %cst_7 : f32 to vector<8x32xf32>
    %9 = arith.maximumf %7, %8 : vector<8x32xf32>
    %c1 = arith.constant 1 : index
    %c0_8 = arith.constant 0 : index
    %c0_9 = arith.constant 0 : index
    %10 = vector.load %arg2[%c1, %c0_8, %c0_9] : memref<2x32x32xf32, #tpu.memory_space<vmem>>, vector<1x32x32xf32>
    %11 = vector.shape_cast %10 : vector<1x32x32xf32> to vector<32x32xf32>
    %cst_10 = arith.constant dense<0.000000e+00> : vector<8x32xf32>
    %12 = tpu.matmul %9, %11, %cst_10 {dimension_numbers = #tpu.dot_dimension_numbers<[1], [0], [0], [1], [0, 0, 1, 1], [], []>} : vector<8x32xf32>, vector<32x32xf32>, vector<8x32xf32> -> vector<8x32xf32>
    %c1_11 = arith.constant 1 : index
    %c0_12 = arith.constant 0 : index
    %c0_13 = arith.constant 0 : index
    %13 = vector.load %arg3[%c1_11, %c0_12, %c0_13] : memref<2x1x32xf32, #tpu.memory_space<vmem>>, vector<1x1x32xf32>
    %14 = vector.shape_cast %13 : vector<1x1x32xf32> to vector<1x32xf32>
    %15 = vector.broadcast %14 : vector<1x32xf32> to vector<8x32xf32>
    %16 = arith.addf %12, %15 : vector<8x32xf32>
    %cst_14 = arith.constant 0.000000e+00 : f32
    %17 = vector.broadcast %cst_14 : f32 to vector<8x32xf32>
    %18 = arith.maximumf %16, %17 : vector<8x32xf32>
    %c0_15 = arith.constant 0 : index
    %c0_16 = arith.constant 0 : index
    %19 = vector.load %arg4[%c0_15, %c0_16] : memref<32x128xf32, #tpu.memory_space<vmem>>, vector<32x128xf32>
    %cst_17 = arith.constant dense<0.000000e+00> : vector<8x128xf32>
    %20 = tpu.matmul %18, %19, %cst_17 {dimension_numbers = #tpu.dot_dimension_numbers<[1], [0], [0], [1], [0, 0, 1, 1], [], []>} : vector<8x32xf32>, vector<32x128xf32>, vector<8x128xf32> -> vector<8x128xf32>
    %c0_18 = arith.constant 0 : index
    %c0_19 = arith.constant 0 : index
    %21 = vector.load %arg5[%c0_18, %c0_19] : memref<1x128xf32, #tpu.memory_space<vmem>>, vector<1x128xf32>
    %22 = vector.broadcast %21 : vector<1x128xf32> to vector<8x128xf32>
    %23 = arith.addf %20, %22 : vector<8x128xf32>
    %c0_20 = arith.constant 0 : index
    %c0_21 = arith.constant 0 : index
    %24 = vector.load %arg6[%c0_20, %c0_21] : memref<8x128xf32, #tpu.memory_space<vmem>>, vector<8x128xf32>
    tpu.vector_store %arg6[%c0_20, %c0_21], %23 {strides = array<i32>} : memref<8x128xf32, #tpu.memory_space<vmem>>, vector<8x128xf32>,
    return
  }
  func.func @transform_0(%arg0: i32) -> (i32, i32) {
    %c0_i32 = arith.constant 0 : i32
    %c0_i32_0 = arith.constant 0 : i32
    return %arg0, %c0_i32 : i32, i32
  }
  func.func @transform_1(%arg0: i32) -> (i32, i32, i32) {
    %c0_i32 = arith.constant 0 : i32
    %c0_i32_0 = arith.constant 0 : i32
    %c0_i32_1 = arith.constant 0 : i32
    %c0_i32_2 = arith.constant 0 : i32
    return %c0_i32, %c0_i32_0, %c0_i32_1 : i32, i32, i32
  }
  func.func @transform_2(%arg0: i32) -> (i32, i32, i32) {
    %c0_i32 = arith.constant 0 : i32
    %c0_i32_0 = arith.constant 0 : i32
    %c0_i32_1 = arith.constant 0 : i32
    %c0_i32_2 = arith.constant 0 : i32
    return %c0_i32, %c0_i32_0, %c0_i32_1 : i32, i32, i32
  }
  func.func @transform_3(%arg0: i32) -> (i32, i32) {
    %c0_i32 = arith.constant 0 : i32
    %c0_i32_0 = arith.constant 0 : i32
    %c0_i32_1 = arith.constant 0 : i32
    return %c0_i32, %c0_i32_0 : i32, i32
  }
  func.func @transform_4(%arg0: i32) -> (i32, i32) {
    %c0_i32 = arith.constant 0 : i32
    %c0_i32_0 = arith.constant 0 : i32
    %c0_i32_1 = arith.constant 0 : i32
    return %c0_i32, %c0_i32_0 : i32, i32
  }
  func.func @transform_5(%arg0: i32) -> (i32, i32) {
    %c0_i32 = arith.constant 0 : i32
    %c0_i32_0 = arith.constant 0 : i32
    return %arg0, %c0_i32 : i32, i32
  }
}

</mosaic_0001>

<llo_original>
// kernel: funcs_forward.1
$region0: #{funcs_forward.1}
  #allocation0 [shape = 'u32[]', space=smem, size = 0x4, offset = 0x4, fixed_abs, tag = 'smem constant byte address 0x4 - core index']
  #allocation1 [shape = 'u32[144,128]{1,0:T(1,128)}', space=vmem, size = 0x12000, scoped, tag = 'internal scratch']
  %s0 = inlined_call_operand.hbm [shape: f32[8,32], index: 0, kind: input, shape index: {}]
  %s1 = inlined_call_operand.hbm [shape: f32[2,32,32], index: 1, kind: input, shape index: {}]
  %s2 = inlined_call_operand.vmem [shape: f32[2,1,32], index: 2, kind: input, shape index: {}]
  %s3 = inlined_call_operand.hbm [shape: f32[32,128], index: 3, kind: input, shape index: {}]
  %s4 = inlined_call_operand.vmem [shape: f32[1,128], index: 4, kind: input, shape index: {}]
  %s5 = inlined_call_operand.hbm [shape: f32[8,128], index: 5, kind: output, shape index: {}]
  %s6 = sld [smem:[#allocation0]]
  $region42: #{funcs_forward.1} parent=0
    _
  %s8 = ssub.s32 1, %s6
  %s9 = scalar_select 0, %s8, %s6
  $region1: #{funcs_forward.1} parent=0
    #allocation2 [shape = 'u8[4096]{0}', space=vmem, size = 0x1000, scoped, tag = 'input window, operand 0, single buffered']
    #allocation3 [shape = 's32[1]{0}', space=sflag, size = 0x4, scoped, tag = 'scoped memory for funcs_forward.1']
    #allocation4 [shape = 's32[1]{0}', space=sflag, size = 0x4, scoped, tag = 'scoped memory for funcs_forward.1']
    #allocation5 [shape = 'u8[32768]{0}', space=vmem, size = 0x8000, scoped, tag = 'input window, operand 1, single buffered']
    #allocation6 [shape = 's32[1]{0}', space=sflag, size = 0x4, scoped, tag = 'scoped memory for funcs_forward.1']
    #allocation7 [shape = 'u8[16384]{0}', space=vmem, size = 0x4000, scoped, tag = 'input window, operand 3, single buffered']
    #allocation8 [shape = 'u8[4096]{0}', space=vmem, size = 0x1000, scoped, tag = 'output window, operand 0, single buffered']
    %10 = vsyncpa [#allocation3], 0
    %11 = vsyncpa [#allocation6], 0
    %12 = vsyncpa [#allocation4], 0
    // Predicated region
    $region2: #{funcs_forward.1} parent=1 // pred_check
      _
    $region3: #{funcs_forward.1} parent=1 // pred_check_branch
      %14 = sbr.rel (0) target = $region5
    $region4: #{funcs_forward.1} parent=1 // pred_region
      %s16 = ssub.s32 128, 128
      %17 = vsyncadd [#allocation3], %s16
      %s19 = sshll.u32 [#allocation2], 4
      %s20 = int_to_ptr.vmem [resolvable:$true] %s19
      %22 = dma.hbm_to_vmem [thread:$0]  %s0, 128, %s20, [#allocation3]
    $region5: #{funcs_forward.1} parent=1 // pred_fallthru
      _
    // Predicated region
    $region6: #{funcs_forward.1} parent=1 // pred_check
      _
    $region7: #{funcs_forward.1} parent=1 // pred_check_branch
      %24 = sbr.rel (0) target = $region9
    $region8: #{funcs_forward.1} parent=1 // pred_region
      %s26 = ssub.s32 1024, 1024
      %27 = vsyncadd [#allocation6], %s26
      %s28 = sshll.u32 [#allocation5], 4
      %s29 = int_to_ptr.vmem [resolvable:$true] %s28
      %34 = dma.hbm_to_vmem [thread:$0]  %s1, 1024, %s29, [#allocation6], 128, 128, 8
    $region9: #{funcs_forward.1} parent=1 // pred_fallthru
      _
    // Predicated region
    $region10: #{funcs_forward.1} parent=1 // pred_check
      _
    $region11: #{funcs_forward.1} parent=1 // pred_check_branch
      %36 = sbr.rel (0) target = $region13
    $region12: #{funcs_forward.1} parent=1 // pred_region
      _
    $region13: #{funcs_forward.1} parent=1 // pred_fallthru
      _
    // Predicated region
    $region14: #{funcs_forward.1} parent=1 // pred_check
      _
    $region15: #{funcs_forward.1} parent=1 // pred_check_branch
      %38 = sbr.rel (0) target = $region17
    $region16: #{funcs_forward.1} parent=1 // pred_region
      %s40 = ssub.s32 512, 512
      %41 = vsyncadd [#allocation6], %s40
      %s42 = sshll.u32 [#allocation7], 4
      %s43 = int_to_ptr.vmem [resolvable:$true] %s42
      %48 = dma.hbm_to_vmem [thread:$0]  %s3, 512, %s43, [#allocation6], 128, 128, 8
    $region17: #{funcs_forward.1} parent=1 // pred_fallthru
      _
    // Predicated region
    $region18: #{funcs_forward.1} parent=1 // pred_check
      _
    $region19: #{funcs_forward.1} parent=1 // pred_check_branch
      %50 = sbr.rel (0) target = $region21
    $region20: #{funcs_forward.1} parent=1 // pred_region
      _
    $region21: #{funcs_forward.1} parent=1 // pred_fallthru
      _
    // Predicated region
    $region22: #{funcs_forward.1} parent=1 // pred_check
      _
    $region23: #{funcs_forward.1} parent=1 // pred_check_branch
      %52 = sbr.rel (0) target = $region25
    $region24: #{funcs_forward.1} parent=1 // pred_region
      %53 = dma.done [#allocation3], 128
    $region25: #{funcs_forward.1} parent=1 // pred_fallthru
      _
    // Predicated region
    $region26: #{funcs_forward.1} parent=1 // pred_check
      _
    $region27: #{funcs_forward.1} parent=1 // pred_check_branch
      %55 = sbr.rel (0) target = $region29
    $region28: #{funcs_forward.1} parent=1 // pred_region
      %56 = dma.done [#allocation6], 1024
    $region29: #{funcs_forward.1} parent=1 // pred_fallthru
      _
    // Predicated region
    $region30: #{funcs_forward.1} parent=1 // pred_check
      _
    $region31: #{funcs_forward.1} parent=1 // pred_check_branch
      %58 = sbr.rel (0) target = $region33
    $region32: #{funcs_forward.1} parent=1 // pred_region
      %59 = dma.done [#allocation6], 512
    $region33: #{funcs_forward.1} parent=1 // pred_fallthru
      _
    %v60 = vld [vmem:[#allocation2] sm:$0xff]
    %v61 = vld [vmem:[#allocation5] sm:$0xff]
    %v62 = vld [vmem:[#allocation5 + $0x8] sm:$0xff]
    %v63 = vld [vmem:[#allocation5 + $0x10] sm:$0xff]
    %v64 = vld [vmem:[#allocation5 + $0x18] sm:$0xff]
    %v65 = vld [vmem:[%s2] sm:$0x1]
    %v67 = vlaneseq
    %v68 = vshrl.u32 %v67, 7
    %v69 = vsub.s32 0, %v68
    %v70 = vrot.slane %v65, %v69
    %vm72 = vcmask 261120
    %v74 = vsel %vm72, %v60, 0
    %76 = vmatprep.subr.mxu0 0.0
    %77 = vmatpush1.msra.mxu0 0.0
    %78 = vmatprep.subr.mxu0 0.0
    %79 = vmatpush1.msra.mxu0 0.0
    %80 = vmatprep.subr.mxu0 0.0
    %81 = vmatpush1.msra.mxu0 0.0
    %82 = vmatprep.subr.mxu0 0.0
    %83 = vmatpush1.msra.mxu0 0.0
    %84 = vmatprep.subr.mxu0 0.0
    %85 = vmatpush1.msra.mxu0 0.0
    %86 = vmatprep.subr.mxu0 0.0
    %87 = vmatpush1.msra.mxu0 0.0
    %88 = vmatprep.subr.mxu0 0.0
    %89 = vmatpush1.msra.mxu0 0.0
    %90 = vmatprep.subr.mxu0 0.0
    %91 = vmatpush1.msra.mxu0 0.0
    %92 = vmatprep.subr.mxu0 0.0
    %93 = vmatpush1.msra.mxu0 0.0
    %94 = vmatprep.subr.mxu0 0.0
    %95 = vmatpush1.msra.mxu0 0.0
    %96 = vmatprep.subr.mxu0 0.0
    %97 = vmatpush1.msra.mxu0 0.0
    %98 = vmatprep.subr.mxu0 0.0
    %99 = vmatpush1.msra.mxu0 0.0
    %100 = vmatprep.subr.mxu0 0.0
    %101 = vmatpush1.msra.mxu0 %v64
    %102 = vmatprep.subr.mxu0 0.0
    %103 = vmatpush1.msra.mxu0 %v63
    %104 = vmatprep.subr.mxu0 0.0
    %105 = vmatpush1.msra.mxu0 %v62
    %106 = vmatprep.subr.mxu0 0.0
    %107 = vmatpush1.msra.mxu0 %v61
    %108 = vmatprep.subr.mxu0 0.0
    %109 = vmatpush2.msra.mxu0 0.0
    %110 = vmatprep.subr.mxu0 0.0
    %111 = vmatpush2.msra.mxu0 0.0
    %112 = vmatprep.subr.mxu0 0.0
    %113 = vmatpush2.msra.mxu0 0.0
    %114 = vmatprep.subr.mxu0 0.0
    %115 = vmatpush2.msra.mxu0 0.0
    %116 = vmatprep.subr.mxu0 0.0
    %117 = vmatpush2.msra.mxu0 0.0
    %118 = vmatprep.subr.mxu0 0.0
    %119 = vmatpush2.msra.mxu0 0.0
    %120 = vmatprep.subr.mxu0 0.0
    %121 = vmatpush2.msra.mxu0 0.0
    %122 = vmatprep.subr.mxu0 0.0
    %123 = vmatpush2.msra.mxu0 0.0
    %124 = vmatprep.subr.mxu0 0.0
    %125 = vmatpush2.msra.mxu0 0.0
    %126 = vmatprep.subr.mxu0 0.0
    %127 = vmatpush2.msra.mxu0 0.0
    %128 = vmatprep.subr.mxu0 0.0
    %129 = vmatpush2.msra.mxu0 0.0
    %130 = vmatprep.subr.mxu0 0.0
    %131 = vmatpush2.msra.mxu0 0.0
    %132 = vmatprep.subr.mxu0 0.0
    %133 = vmatpush2.msra.mxu0 0.0
    %134 = vmatprep.subr.mxu0 0.0
    %135 = vmatpush2.msra.mxu0 0.0
    %136 = vmatprep.subr.mxu0 0.0
    %137 = vmatpush2.msra.mxu0 0.0
    %138 = vmatprep.subr.mxu0 0.0
    %139 = vmatpush2.msra.mxu0 0.0
    %140 = vmatprep.mubr.f32.mxu0 0.0
    %141 = vmatmul.mubr.f32.gmra.mxu0 %v74
    %v142 = vpop.f32.mrf.mxu0
    %v143 = vadd.f32 %v70, %v142
    %v144 = vpop.f32.mrf.mxu0
    %145 = vdwg.mxu0
    %v146 = vmax.f32 %v143, 0.0
    %s147 = scalar_lea.vmem [#allocation5], 32
    %v148 = vld [vmem:[%s147] sm:$0xff]
    %v149 = vld [vmem:[%s147 + $0x8] sm:$0xff]
    %v150 = vld [vmem:[%s147 + $0x10] sm:$0xff]
    %v151 = vld [vmem:[%s147 + $0x18] sm:$0xff]
    %s152 = scalar_lea.vmem %s2, 1
    %v153 = vld [vmem:[%s152] sm:$0x1]
    %v155 = vlaneseq
    %v156 = vshrl.u32 %v155, 7
    %v157 = vsub.s32 0, %v156
    %v158 = vrot.slane %v153, %v157
    %v161 = vsel %vm72, %v146, 0
    %163 = vmatprep.subr.mxu0 0.0
    %164 = vmatpush1.msra.mxu0 0.0
    %165 = vmatprep.subr.mxu0 0.0
    %166 = vmatpush1.msra.mxu0 0.0
    %167 = vmatprep.subr.mxu0 0.0
    %168 = vmatpush1.msra.mxu0 0.0
    %169 = vmatprep.subr.mxu0 0.0
    %170 = vmatpush1.msra.mxu0 0.0
    %171 = vmatprep.subr.mxu0 0.0
    %172 = vmatpush1.msra.mxu0 0.0
    %173 = vmatprep.subr.mxu0 0.0
    %174 = vmatpush1.msra.mxu0 0.0
    %175 = vmatprep.subr.mxu0 0.0
    %176 = vmatpush1.msra.mxu0 0.0
    %177 = vmatprep.subr.mxu0 0.0
    %178 = vmatpush1.msra.mxu0 0.0
    %179 = vmatprep.subr.mxu0 0.0
    %180 = vmatpush1.msra.mxu0 0.0
    %181 = vmatprep.subr.mxu0 0.0
    %182 = vmatpush1.msra.mxu0 0.0
    %183 = vmatprep.subr.mxu0 0.0
    %184 = vmatpush1.msra.mxu0 0.0
    %185 = vmatprep.subr.mxu0 0.0
    %186 = vmatpush1.msra.mxu0 0.0
    %187 = vmatprep.subr.mxu0 0.0
    %188 = vmatpush1.msra.mxu0 %v151
    %189 = vmatprep.subr.mxu0 0.0
    %190 = vmatpush1.msra.mxu0 %v150
    %191 = vmatprep.subr.mxu0 0.0
    %192 = vmatpush1.msra.mxu0 %v149
    %193 = vmatprep.subr.mxu0 0.0
    %194 = vmatpush1.msra.mxu0 %v148
    %195 = vmatprep.subr.mxu0 0.0
    %196 = vmatpush2.msra.mxu0 0.0
    %197 = vmatprep.subr.mxu0 0.0
    %198 = vmatpush2.msra.mxu0 0.0
    %199 = vmatprep.subr.mxu0 0.0
    %200 = vmatpush2.msra.mxu0 0.0
    %201 = vmatprep.subr.mxu0 0.0
    %202 = vmatpush2.msra.mxu0 0.0
    %203 = vmatprep.subr.mxu0 0.0
    %204 = vmatpush2.msra.mxu0 0.0
    %205 = vmatprep.subr.mxu0 0.0
    %206 = vmatpush2.msra.mxu0 0.0
    %207 = vmatprep.subr.mxu0 0.0
    %208 = vmatpush2.msra.mxu0 0.0
    %209 = vmatprep.subr.mxu0 0.0
    %210 = vmatpush2.msra.mxu0 0.0
    %211 = vmatprep.subr.mxu0 0.0
    %212 = vmatpush2.msra.mxu0 0.0
    %213 = vmatprep.subr.mxu0 0.0
    %214 = vmatpush2.msra.mxu0 0.0
    %215 = vmatprep.subr.mxu0 0.0
    %216 = vmatpush2.msra.mxu0 0.0
    %217 = vmatprep.subr.mxu0 0.0
    %218 = vmatpush2.msra.mxu0 0.0
    %219 = vmatprep.subr.mxu0 0.0
    %220 = vmatpush2.msra.mxu0 0.0
    %221 = vmatprep.subr.mxu0 0.0
    %222 = vmatpush2.msra.mxu0 0.0
    %223 = vmatprep.subr.mxu0 0.0
    %224 = vmatpush2.msra.mxu0 0.0
    %225 = vmatprep.subr.mxu0 0.0
    %226 = vmatpush2.msra.mxu0 0.0
    %227 = vmatprep.mubr.f32.mxu0 0.0
    %228 = vmatmul.mubr.f32.gmra.mxu0 %v161
    %v229 = vpop.f32.mrf.mxu0
    %v230 = vadd.f32 %v158, %v229
    %v231 = vpop.f32.mrf.mxu0
    %232 = vdwg.mxu0
    %v233 = vmax.f32 %v230, 0.0
    %v234 = vld [vmem:[#allocation7] sm:$0xff]
    %v235 = vld [vmem:[#allocation7 + $0x8] sm:$0xff]
    %v236 = vld [vmem:[#allocation7 + $0x10] sm:$0xff]
    %v237 = vld [vmem:[#allocation7 + $0x18] sm:$0xff]
    %v238 = vld [vmem:[%s4] sm:$0x1]
    %v240 = vlaneseq
    %v241 = vshrl.u32 %v240, 7
    %v242 = vsub.s32 0, %v241
    %v243 = vrot.slane %v238, %v242
    %v246 = vsel %vm72, %v233, 0
    %248 = vmatprep.subr.mxu0 0.0
    %249 = vmatpush1.msra.mxu0 0.0
    %250 = vmatprep.subr.mxu0 0.0
    %251 = vmatpush1.msra.mxu0 0.0
    %252 = vmatprep.subr.mxu0 0.0
    %253 = vmatpush1.msra.mxu0 0.0
    %254 = vmatprep.subr.mxu0 0.0
    %255 = vmatpush1.msra.mxu0 0.0
    %256 = vmatprep.subr.mxu0 0.0
    %257 = vmatpush1.msra.mxu0 0.0
    %258 = vmatprep.subr.mxu0 0.0
    %259 = vmatpush1.msra.mxu0 0.0
    %260 = vmatprep.subr.mxu0 0.0
    %261 = vmatpush1.msra.mxu0 0.0
    %262 = vmatprep.subr.mxu0 0.0
    %263 = vmatpush1.msra.mxu0 0.0
    %264 = vmatprep.subr.mxu0 0.0
    %265 = vmatpush1.msra.mxu0 0.0
    %266 = vmatprep.subr.mxu0 0.0
    %267 = vmatpush1.msra.mxu0 0.0
    %268 = vmatprep.subr.mxu0 0.0
    %269 = vmatpush1.msra.mxu0 0.0
    %270 = vmatprep.subr.mxu0 0.0
    %271 = vmatpush1.msra.mxu0 0.0
    %272 = vmatprep.subr.mxu0 0.0
    %273 = vmatpush1.msra.mxu0 %v237
    %274 = vmatprep.subr.mxu0 0.0
    %275 = vmatpush1.msra.mxu0 %v236
    %276 = vmatprep.subr.mxu0 0.0
    %277 = vmatpush1.msra.mxu0 %v235
    %278 = vmatprep.subr.mxu0 0.0
    %279 = vmatpush1.msra.mxu0 %v234
    %280 = vmatprep.subr.mxu0 0.0
    %281 = vmatpush2.msra.mxu0 0.0
    %282 = vmatprep.subr.mxu0 0.0
    %283 = vmatpush2.msra.mxu0 0.0
    %284 = vmatprep.subr.mxu0 0.0
    %285 = vmatpush2.msra.mxu0 0.0
    %286 = vmatprep.subr.mxu0 0.0
    %287 = vmatpush2.msra.mxu0 0.0
    %288 = vmatprep.subr.mxu0 0.0
    %289 = vmatpush2.msra.mxu0 0.0
    %290 = vmatprep.subr.mxu0 0.0
    %291 = vmatpush2.msra.mxu0 0.0
    %292 = vmatprep.subr.mxu0 0.0
    %293 = vmatpush2.msra.mxu0 0.0
    %294 = vmatprep.subr.mxu0 0.0
    %295 = vmatpush2.msra.mxu0 0.0
    %296 = vmatprep.subr.mxu0 0.0
    %297 = vmatpush2.msra.mxu0 0.0
    %298 = vmatprep.subr.mxu0 0.0
    %299 = vmatpush2.msra.mxu0 0.0
    %300 = vmatprep.subr.mxu0 0.0
    %301 = vmatpush2.msra.mxu0 0.0
    %302 = vmatprep.subr.mxu0 0.0
    %303 = vmatpush2.msra.mxu0 0.0
    %304 = vmatprep.subr.mxu0 0.0
    %305 = vmatpush2.msra.mxu0 0.0
    %306 = vmatprep.subr.mxu0 0.0
    %307 = vmatpush2.msra.mxu0 0.0
    %308 = vmatprep.subr.mxu0 0.0
    %309 = vmatpush2.msra.mxu0 0.0
    %310 = vmatprep.subr.mxu0 0.0
    %311 = vmatpush2.msra.mxu0 0.0
    %312 = vmatprep.mubr.f32.mxu0 0.0
    %313 = vmatmul.mubr.f32.gmra.mxu0 %v246
    %v314 = vpop.f32.mrf.mxu0
    %v315 = vadd.f32 %v243, %v314
    %v316 = vpop.f32.mrf.mxu0
    %317 = vdwg.mxu0
    %318 = vst [vmem:[#allocation8] sm:$0xff] %v315
    // Predicated region
    $region34: #{funcs_forward.1} parent=1 // pred_check
      _
    $region35: #{funcs_forward.1} parent=1 // pred_check_branch
      %320 = sbr.rel (0) target = $region37
    $region36: #{funcs_forward.1} parent=1 // pred_region
      %s322 = ssub.s32 128, 128
      %323 = vsyncadd [#allocation4], %s322
      %s325 = sshll.u32 [#allocation8], 4
      %s326 = int_to_ptr.vmem [resolvable:$true] %s325
      %328 = dma.vmem_to_hbm [thread:$0]  %s326, 128, %s5, [#allocation4]
    $region37: #{funcs_forward.1} parent=1 // pred_fallthru
      _
    // Predicated region
    $region38: #{funcs_forward.1} parent=1 // pred_check
      _
    $region39: #{funcs_forward.1} parent=1 // pred_check_branch
      %330 = sbr.rel (0) target = $region41
    $region40: #{funcs_forward.1} parent=1 // pred_region
      %331 = dma.done [#allocation4], 128
    $region41: #{funcs_forward.1} parent=1 // pred_fallthru
      _
    %332 = vsyncpa [#allocation3], 1
    %333 = vsyncpa [#allocation6], 1
    %334 = vsyncpa [#allocation4], 1

</llo_original>
